<compile_context>
chip_gen: v5e
topology: v5e:2x2
jax: 0.10.0
libtpu: 0.0.40
codegen_flags: <defaults>
</compile_context>

<pallas_src>
import numpy as np
import jax
import jax.numpy as jnp
from jax.experimental import pallas as pl
from jax.experimental.pallas import tpu as pltpu


# ----------------------------------------------------------------------------
# Host-side (numpy, init-time) finite-difference operators.  The dense
# matrices are built only to extract stencil bands and to provide a float64
# reference; they are never shipped to the TPU.
# ----------------------------------------------------------------------------
def diff1_matrix_nonperiodic(y):
    y = np.asarray(y, dtype=np.float64)
    n = y.shape[0]
    D = np.zeros((n, n), dtype=np.float64)
    for j in range(n):
        if j == 0:
            h1, h2 = y[1] - y[0], y[2] - y[1]
            D[0, 0] = -(2 * h1 + h2) / (h1 * (h1 + h2))
            D[0, 1] = (h1 + h2) / (h1 * h2)
            D[0, 2] = -h1 / (h2 * (h1 + h2))
        elif j == n - 1:
            h1, h2 = y[n - 2] - y[n - 3], y[n - 1] - y[n - 2]
            D[j, n - 3] = h2 / (h1 * (h1 + h2))
            D[j, n - 2] = -(h1 + h2) / (h1 * h2)
            D[j, n - 1] = (h1 + 2 * h2) / (h2 * (h1 + h2))
        else:
            h1, h2 = y[j] - y[j - 1], y[j + 1] - y[j]
            D[j, j - 1] = -h2 / (h1 * (h1 + h2))
            D[j, j] = (h2 - h1) / (h1 * h2)
            D[j, j + 1] = h1 / (h2 * (h1 + h2))
    return D


def diff2_matrix_nonperiodic(y):
    y = np.asarray(y, dtype=np.float64)
    n = y.shape[0]
    D = np.zeros((n, n), dtype=np.float64)
    for j in range(n):
        if j == 0:
            jm, jc, jp = 0, 1, 2
        elif j == n - 1:
            jm, jc, jp = n - 3, n - 2, n - 1
        else:
            jm, jc, jp = j - 1, j, j + 1
        h1, h2 = y[jc] - y[jm], y[jp] - y[jc]
        D[j, jm] += 2.0 / (h1 * (h1 + h2))
        D[j, jc] += -2.0 / (h1 * h2)
        D[j, jp] += 2.0 / (h2 * (h1 + h2))
    return D


def diff1_matrix_periodic(x, dx):
    x = np.asarray(x, dtype=np.float64)
    n = x.shape[0]
    D = np.zeros((n, n), dtype=np.float64)
    for j in range(n):
        jm, jp = (j - 1) % n, (j + 1) % n
        h1 = x[j] - x[jm] if j > 0 else dx
        h2 = x[jp] - x[j] if j < n - 1 else dx
        D[j, jm] += -h2 / (h1 * (h1 + h2))
        D[j, j] += (h2 - h1) / (h1 * h2)
        D[j, jp] += h1 / (h2 * (h1 + h2))
    return D


def diff2_matrix_periodic(x, dx):
    x = np.asarray(x, dtype=np.float64)
    n = x.shape[0]
    D = np.zeros((n, n), dtype=np.float64)
    for j in range(n):
        jm, jp = (j - 1) % n, (j + 1) % n
        h1 = x[j] - x[jm] if j > 0 else dx
        h2 = x[jp] - x[j] if j < n - 1 else dx
        D[j, jm] += 2.0 / (h1 * (h1 + h2))
        D[j, j] += -2.0 / (h1 * h2)
        D[j, jp] += 2.0 / (h2 * (h1 + h2))
    return D


def _periodic_tridiag(D):
    """(N, 3) stencil coefficients [a(j-1), a(j), a(j+1)] of a periodic op."""
    n = D.shape[0]
    idx = np.arange(n)
    return np.stack([D[idx, (idx - 1) % n], D[idx, idx], D[idx, (idx + 1) % n]],
                    axis=1)


def _banded_rows(D, offsets=(-2, -1, 0, 1, 2)):
    """(5, N) bands c_k[j] = D[j, j+k] (0 outside), covers one-sided rows."""
    n = D.shape[0]
    out = np.zeros((len(offsets), n), dtype=np.float64)
    idx = np.arange(n)
    for r, k in enumerate(offsets):
        valid = (idx + k >= 0) & (idx + k < n)
        out[r, valid] = D[idx[valid], idx[valid] + k]
    return out


# ----------------------------------------------------------------------------
# Pallas kernel: fused stencil ERA5_pressure.forward for one x-row tile
# ----------------------------------------------------------------------------
def era5_pressure_kernel(u_ref, v_ref, phi_ref, halo_ref, xc_ref, yc_ref,
                         yv_ref, o_ref):
    u = u_ref[...]            # (TM, Nyp)
    v = v_ref[...]
    phi = phi_ref[...]
    halo = halo_ref[...]      # (6, Nyp): [u_prev, u_next, v_prev, v_next, phi_prev, phi_next]
    xc = xc_ref[...]          # (TM, 6):  [d1x m,0,p | d2x m,0,p]
    yc = yc_ref[...]          # (10, Nyp): rows 0-4 d1y bands (-2..+2), 5-9 = 0.001*d2y bands
    yv = yv_ref[...]          # (5, Nyp): [mf, m2_diff_1_m, f, 0.001*mf^2, interior_mask]

    mf = yv[0:1]
    m2 = yv[1:2]
    fcor = yv[2:3]
    cvis = yv[3:4]            # 0.001 * map_factor**2 (folded diffusion scale)
    mask = yv[4:5]            # 1 in the y interior, 0 at j=0 / j=Ny-1 / pad

    c1m, c10, c1p = xc[:, 0:1], xc[:, 1:2], xc[:, 2:3]
    c2m, c20, c2p = xc[:, 3:4], xc[:, 4:5], xc[:, 5:6]

    tm = u.shape[0]
    nyp = u.shape[1]

    # hoisted elementwise temporaries
    mfu = mf * u
    phiv = phi * v
    f_star = fcor - u * m2

    # accumulate-as-you-go: build du/dv/dphi term by term
    du = f_star * v
    dv = -f_star * u

    # ---- x direction: periodic 3-point stencil along sublanes (halo rows) --
    row = jax.lax.broadcasted_iota(jnp.int32, u.shape, dimension=0)
    first_row = row == 0
    last_row = row == (tm - 1)

    def xshift(a, prev_row, next_row):
        a_m = jnp.where(first_row, prev_row, pltpu.roll(a, 1, axis=0))      # a[i-1]
        a_p = jnp.where(last_row, next_row, pltpu.roll(a, tm - 1, axis=0))  # a[i+1]
        return a_m, a_p

    u_m, u_p = xshift(u, halo[0:1], halo[1:2])
    p_m, p_p = xshift(phi, halo[4:5], halo[5:6])

    du += -mfu * (c1m * u_m + c10 * u + c1p * u_p)          # -mf*u*d1x(u)
    du += cvis * (c2m * u_m + c20 * u + c2p * u_p)          # 0.001*mf^2*d2x(u)
    du += -mf * (c1m * p_m + c10 * phi + c1p * p_p)         # -mf*d1x(phi)

    phiu = phi * u
    dphi = -mf * (c1m * (p_m * u_m) + c10 * phiu + c1p * (p_p * u_p))   # -mf*d1x(phi*u)
    dphi += cvis * (c2m * p_m + c20 * phi + c2p * p_p)                  # 0.001*mf^2*d2x(phi)

    v_m, v_p = xshift(v, halo[2:3], halo[3:4])
    dv += -mfu * (c1m * v_m + c10 * v + c1p * v_p)          # -mf*u*d1x(v)
    dv += cvis * (c2m * v_m + c20 * v + c2p * v_p)          # 0.001*mf^2*d2x(v)

    # ---- y direction: non-periodic 5-band stencil along lanes (XLU rolls) --
    c1y = yc[0:5]
    c2y = yc[5:10]            # already scaled by 0.001

    def ybands(a):
        return (pltpu.roll(a, 2, axis=1),          # a[:, j-2]
                pltpu.roll(a, 1, axis=1),          # a[:, j-1]
                pltpu.roll(a, nyp - 1, axis=1),    # a[:, j+1]
                pltpu.roll(a, nyp - 2, axis=1))    # a[:, j+2]

    def ysten(a, bands, c):
        bm2, bm1, bp1, bp2 = bands
        return (c[0:1] * bm2 + c[1:2] * bm1 + c[2:3] * a
                + c[3:4] * bp1 + c[4:5] * bp2)

    bu = ybands(u)
    du += -v * ysten(u, bu, c1y) + ysten(u, bu, c2y)        # -v*d1y(u) + 0.001*d2y(u)
    bv = ybands(v)
    dv += -v * ysten(v, bv, c1y) + ysten(v, bv, c2y)        # -v*d1y(v) + 0.001*d2y(v)
    bp = ybands(phi)
    dv += -ysten(phi, bp, c1y)                              # -d1y(phi)
    dphi += ysten(phi, bp, c2y)                             # 0.001*d2y(phi)
    bpv = ybands(phiv)
    dphi += -ysten(phiv, bpv, c1y)                          # -d1y(phi*v)

    # boundary condition: result[0:2, :, 0] = result[0:2, :, -1] = 0
    o_ref[0, :, :] = du * mask
    o_ref[1, :, :] = dv * mask
    o_ref[2, :, :] = dphi


# ----------------------------------------------------------------------------
# Wrapper
# ----------------------------------------------------------------------------
class ERA5PressurePallas:
    """JAX/Pallas TPU re-implementation of ERA5_pressure.forward."""

    LANE = 128

    def __init__(self, grid_info, block_rows=None):
        dx, dy, grid_x, grid_y, vector_x, vector_y, map_factor = grid_info
        mf2d = np.asarray(map_factor, dtype=np.float64)
        nx, ny = mf2d.shape

        # NOTE: on an ERA5 lat-lon grid map_factor / grid_y depend only on
        # latitude, so the first x-row is representative -> (1, Ny) operands.
        mf_y = mf2d[0, :].copy()
        gy_y = np.asarray(grid_y, dtype=np.float64)[0, :]

        # dense operators (host only: band extraction + float64 reference)
        Dx1 = diff1_matrix_periodic(vector_x, dx)
        Dx2 = diff2_matrix_periodic(vector_x, dx)
        Dy1 = diff1_matrix_nonperiodic(vector_y)
        Dy2 = diff2_matrix_nonperiodic(vector_y)
        self._Dx1, self._Dx2, self._Dy1, self._Dy2 = Dx1, Dx2, Dy1, Dy2

        m2_y = mf_y ** 2 * (Dy1 @ (1.0 / mf_y))
        f_y = 2.0 * 7e-05 * np.sin(2.0 * np.pi / 360.0 * gy_y / dy)
        self._mf_y, self._m2_y, self._f_y = mf_y, m2_y, f_y

        # ---- tiling over x rows -------------------------------------------
        if block_rows is None:
            block_rows = nx
            for cand in (256, 128, 64, 32, 16, 8):
                if nx % cand == 0:
                    block_rows = cand
                    break
        assert nx % block_rows == 0, "block_rows must divide Nx"
        assert block_rows == nx or block_rows % 8 == 0, \
            "block_rows must be a multiple of 8 (or equal Nx)"
        nyp = max(self.LANE, -(-ny // self.LANE) * self.LANE)  # pad lanes to 128
        self.nx, self.ny, self.nyp = nx, ny, nyp
        self.tm = block_rows
        self.nb = nx // block_rows

        # ---- packed device-side constants ---------------------------------
        xcoef = np.concatenate(
            [_periodic_tridiag(Dx1), _periodic_tridiag(Dx2)], axis=1)  # (nx, 6)
        self.xcoef = jnp.asarray(xcoef, dtype=jnp.float32)

        ycoef = np.zeros((10, nyp), dtype=np.float64)
        ycoef[0:5, :ny] = _banded_rows(Dy1)
        ycoef[5:10, :ny] = 0.001 * _banded_rows(Dy2)   # fold diffusion coeff
        self.ycoef = jnp.asarray(ycoef, dtype=jnp.float32)

        yvec = np.zeros((5, nyp), dtype=np.float64)
        yvec[0, :ny] = mf_y
        yvec[1, :ny] = m2_y
        yvec[2, :ny] = f_y
        yvec[3, :ny] = 0.001 * mf_y ** 2
        yvec[4, 1:ny - 1] = 1.0                        # interior mask (du/dv BC)
        self.yvec = jnp.asarray(yvec, dtype=jnp.float32)

        starts = np.arange(self.nb) * self.tm
        self._prev_idx = (starts - 1) % nx
        self._next_idx = (starts + self.tm) % nx

        self._jit_forward = jax.jit(self._forward)

    def _forward(self, u, v, phi):
        nx, ny, nyp, tm, nb = self.nx, self.ny, self.nyp, self.tm, self.nb
        pad = nyp - ny
        if pad:
            u = jnp.pad(u, ((0, 0), (0, pad)))
            v = jnp.pad(v, ((0, 0), (0, pad)))
            phi = jnp.pad(phi, ((0, 0), (0, pad)))

        # periodic x-halo rows for every tile: (nb, 6, nyp) -- tiny
        halos = jnp.stack([u[self._prev_idx], u[self._next_idx],
                           v[self._prev_idx], v[self._next_idx],
                           phi[self._prev_idx], phi[self._next_idx]], axis=1)

        field_spec = pl.BlockSpec((tm, nyp), lambda i: (i, 0))
        out = pl.pallas_call(
            era5_pressure_kernel,
            out_shape=jax.ShapeDtypeStruct((3, nx, nyp), jnp.float32),
            grid=(nb,),
            in_specs=[
                field_spec,                                        # u
                field_spec,                                        # v
                field_spec,                                        # phi
                pl.BlockSpec((None, 6, nyp), lambda i: (i, 0, 0)),  # halos
                pl.BlockSpec((tm, 6), lambda i: (i, 0)),           # x stencil coefs
                pl.BlockSpec((10, nyp), lambda i: (0, 0)),         # y stencil bands
                pl.BlockSpec((5, nyp), lambda i: (0, 0)),          # y-only vectors
            ],
            out_specs=pl.BlockSpec((3, tm, nyp), lambda i: (0, i, 0)),
            compiler_params=pltpu.CompilerParams(
                dimension_semantics=("parallel",),
                vmem_limit_bytes=48 * 1024 * 1024),
        )(u, v, phi, halos, self.xcoef, self.ycoef, self.yvec)
        return out[:, :, :ny]

    def __call__(self, t, state):
        u, v, phi = state
        return self._jit_forward(u, v, phi)

    # pure numpy float64 reference for verification (dense-matrix form)
    def reference(self, state):
        u, v, phi = (np.asarray(s, dtype=np.float64) for s in state)
        Dx1, Dx2, Dy1, Dy2 = self._Dx1, self._Dx2, self._Dy1, self._Dy2
        mf = self._mf_y[None, :]
        m2 = self._m2_y[None, :]
        f = self._f_y[None, :]
        d1x = lambda a: Dx1 @ a
        d2x = lambda a: Dx2 @ a
        d1y = lambda a: a @ Dy1.T
        d2y = lambda a: a @ Dy2.T
        f_star = f - u * m2
        du = (-mf * u * d1x(u) - v * d1y(u) - mf * d1x(phi)
              + 0.001 * (mf ** 2 * d2x(u) + d2y(u)) + f_star * v)
        dv = (-mf * u * d1x(v) - v * d1y(v) - d1y(phi)
              + 0.001 * (mf ** 2 * d2x(v) + d2y(v)) - f_star * u)
        dphi = (-mf * d1x(phi * u) - d1y(phi * v)
                + 0.001 * (mf ** 2 * d2x(phi) + d2y(phi)))
        res = np.stack([du, dv, dphi])
        res[0:2, :, 0] = 0.0
        res[0:2, :, -1] = 0.0
        return res


# ----------------------------------------------------------------------------
# Demo
# ----------------------------------------------------------------------------
def make_grid_info(nx=32, ny=48):
    dx = 360.0 / nx                      # longitude spacing (deg), periodic
    lat = np.linspace(-80.0, 80.0, ny)   # latitude (deg), non-periodic
    dy = lat[1] - lat[0]
    lon = np.arange(nx) * dx
    grid_x = np.repeat(lon[:, None], ny, axis=1)           # (nx, ny)
    grid_y = np.repeat(lat[None, :] * dy, nx, axis=0)      # grid_y / dy = lat
    map_factor = (1.0 / np.cos(np.deg2rad(lat)))[None, :] * np.ones((nx, 1))
    return (dx, dy, grid_x, grid_y, lon, lat, map_factor.astype(np.float32))


if __name__ == "__main__":
    nx, ny = 32, 48
    grid_info = make_grid_info(nx, ny)

    key = jax.random.PRNGKey(0)
    ku, kv, kp = jax.random.split(key, 3)
    u = jax.random.normal(ku, (nx, ny), dtype=jnp.float32)
    v = jax.random.normal(kv, (nx, ny), dtype=jnp.float32)
    phi = 1.0 + 0.1 * jax.random.normal(kp, (nx, ny), dtype=jnp.float32)

    # tiled path: 4 row blocks of 8 -> exercises the grid + periodic halos
    model = ERA5PressurePallas(grid_info, block_rows=8)
    out = jax.block_until_ready(model(0.0, (u, v, phi)))
    ref = model.reference((u, v, phi))
    np.testing.assert_allclose(np.asarray(out), ref, rtol=2e-3, atol=1e-4)

    # single-block path (auto tiling picks block_rows == nx here)
    model1 = ERA5PressurePallas(grid_info)
    out1 = jax.block_until_ready(model1(0.0, (u, v, phi)))
    np.testing.assert_allclose(np.asarray(out1), ref, rtol=2e-3, atol=1e-4)

    print("KERNEL_OK")
</pallas_src>

<mosaic_0001>
module attributes {stable_mosaic.version = 11 : i64} {
  func.func @era5_pressure_kernel(%arg0: i32, %arg1: memref<8x128xf32, #tpu.memory_space<vmem>>, %arg2: memref<8x128xf32, #tpu.memory_space<vmem>>, %arg3: memref<8x128xf32, #tpu.memory_space<vmem>>, %arg4: memref<1x6x128xf32, #tpu.memory_space<vmem>>, %arg5: memref<8x6xf32, #tpu.memory_space<vmem>>, %arg6: memref<10x128xf32, #tpu.memory_space<vmem>>, %arg7: memref<5x128xf32, #tpu.memory_space<vmem>>, %arg8: memref<3x8x128xf32, #tpu.memory_space<vmem>>) attributes {dimension_semantics = [#tpu.dimension_semantics<parallel>], iteration_bounds = array<i64: 4>, scalar_prefetch = 0 : i64, scratch_operands = 0 : i64, tpu.core_type = #tpu.core_type<tc>, window_params = [{transform_indices = @transform_0, window_bounds = array<i64: 8, 128>}, {transform_indices = @transform_1, window_bounds = array<i64: 8, 128>}, {transform_indices = @transform_2, window_bounds = array<i64: 8, 128>}, {transform_indices = @transform_3, window_bounds = array<i64: 1, 6, 128>}, {transform_indices = @transform_4, window_bounds = array<i64: 8, 6>}, {pipeline_mode = #tpu.pipeline_mode<synchronous>, transform_indices = @transform_5, window_bounds = array<i64: 10, 128>}, {pipeline_mode = #tpu.pipeline_mode<synchronous>, transform_indices = @transform_6, window_bounds = array<i64: 5, 128>}, {transform_indices = @transform_7, window_bounds = array<i64: 3, 8, 128>}]} {
    %c0 = arith.constant 0 : index
    %c0_0 = arith.constant 0 : index
    %0 = vector.load %arg1[%c0, %c0_0] : memref<8x128xf32, #tpu.memory_space<vmem>>, vector<8x128xf32>
    %c0_1 = arith.constant 0 : index
    %c0_2 = arith.constant 0 : index
    %1 = vector.load %arg2[%c0_1, %c0_2] : memref<8x128xf32, #tpu.memory_space<vmem>>, vector<8x128xf32>
    %c0_3 = arith.constant 0 : index
    %c0_4 = arith.constant 0 : index
    %2 = vector.load %arg3[%c0_3, %c0_4] : memref<8x128xf32, #tpu.memory_space<vmem>>, vector<8x128xf32>
    %c0_5 = arith.constant 0 : index
    %c0_6 = arith.constant 0 : index
    %c0_7 = arith.constant 0 : index
    %3 = vector.load %arg4[%c0_5, %c0_6, %c0_7] : memref<1x6x128xf32, #tpu.memory_space<vmem>>, vector<1x6x128xf32>
    %4 = vector.shape_cast %3 : vector<1x6x128xf32> to vector<6x128xf32>
    %c0_8 = arith.constant 0 : index
    %c0_9 = arith.constant 0 : index
    %5 = vector.load %arg5[%c0_8, %c0_9] : memref<8x6xf32, #tpu.memory_space<vmem>>, vector<8x6xf32>
    %c0_10 = arith.constant 0 : index
    %c0_11 = arith.constant 0 : index
    %6 = vector.load %arg6[%c0_10, %c0_11] : memref<10x128xf32, #tpu.memory_space<vmem>>, vector<10x128xf32>
    %c0_12 = arith.constant 0 : index
    %c0_13 = arith.constant 0 : index
    %7 = vector.load %arg7[%c0_12, %c0_13] : memref<5x128xf32, #tpu.memory_space<vmem>>, vector<5x128xf32>
    %8 = vector.extract_strided_slice %7 {offsets = [0, 0], sizes = [1, 128], strides = [1, 1]} : vector<5x128xf32> to vector<1x128xf32>
    %9 = vector.extract_strided_slice %7 {offsets = [1, 0], sizes = [1, 128], strides = [1, 1]} : vector<5x128xf32> to vector<1x128xf32>
    %10 = vector.extract_strided_slice %7 {offsets = [2, 0], sizes = [1, 128], strides = [1, 1]} : vector<5x128xf32> to vector<1x128xf32>
    %11 = vector.extract_strided_slice %7 {offsets = [3, 0], sizes = [1, 128], strides = [1, 1]} : vector<5x128xf32> to vector<1x128xf32>
    %12 = vector.extract_strided_slice %7 {offsets = [4, 0], sizes = [1, 128], strides = [1, 1]} : vector<5x128xf32> to vector<1x128xf32>
    %13 = vector.extract_strided_slice %5 {offsets = [0, 0], sizes = [8, 1], strides = [1, 1]} : vector<8x6xf32> to vector<8x1xf32>
    %14 = vector.extract_strided_slice %5 {offsets = [0, 1], sizes = [8, 1], strides = [1, 1]} : vector<8x6xf32> to vector<8x1xf32>
    %15 = vector.extract_strided_slice %5 {offsets = [0, 2], sizes = [8, 1], strides = [1, 1]} : vector<8x6xf32> to vector<8x1xf32>
    %16 = vector.extract_strided_slice %5 {offsets = [0, 3], sizes = [8, 1], strides = [1, 1]} : vector<8x6xf32> to vector<8x1xf32>
    %17 = vector.extract_strided_slice %5 {offsets = [0, 4], sizes = [8, 1], strides = [1, 1]} : vector<8x6xf32> to vector<8x1xf32>
    %18 = vector.extract_strided_slice %5 {offsets = [0, 5], sizes = [8, 1], strides = [1, 1]} : vector<8x6xf32> to vector<8x1xf32>
    %19 = vector.broadcast %8 : vector<1x128xf32> to vector<8x128xf32>
    %20 = arith.mulf %19, %0 : vector<8x128xf32>
    %21 = arith.mulf %2, %1 : vector<8x128xf32>
    %22 = vector.broadcast %9 : vector<1x128xf32> to vector<8x128xf32>
    %23 = arith.mulf %0, %22 : vector<8x128xf32>
    %24 = vector.broadcast %10 : vector<1x128xf32> to vector<8x128xf32>
    %25 = arith.subf %24, %23 : vector<8x128xf32>
    %26 = arith.mulf %25, %1 : vector<8x128xf32>
    %cst = arith.constant 0.000000e+00 : f32
    %27 = vector.broadcast %cst : f32 to vector<8x128xf32>
    %28 = arith.subf %27, %25 : vector<8x128xf32>
    %29 = arith.mulf %28, %0 : vector<8x128xf32>
    %30 = tpu.iota {dimensions = array<i32: 0>} : vector<8x128xi32>
    %c0_i32 = arith.constant 0 : i32
    %31 = vector.broadcast %c0_i32 : i32 to vector<8x128xi32>
    %32 = arith.cmpi eq, %30, %31 : vector<8x128xi32>
    %c7_i32 = arith.constant 7 : i32
    %33 = vector.broadcast %c7_i32 : i32 to vector<8x128xi32>
    %34 = arith.cmpi eq, %30, %33 : vector<8x128xi32>
    %35 = vector.extract_strided_slice %4 {offsets = [0, 0], sizes = [1, 128], strides = [1, 1]} : vector<6x128xf32> to vector<1x128xf32>
    %36 = vector.extract_strided_slice %4 {offsets = [1, 0], sizes = [1, 128], strides = [1, 1]} : vector<6x128xf32> to vector<1x128xf32>
    %c1_i32 = arith.constant 1 : i32
    %37 = tpu.dynamic_rotate %0 by %c1_i32 dim 0 : vector<8x128xf32>, i32 -> vector<8x128xf32>
    %38 = vector.shape_cast %35 : vector<1x128xf32> to vector<1x128xf32>
    %39 = vector.broadcast %38 : vector<1x128xf32> to vector<8x128xf32>
    %40 = arith.select %32, %39, %37 : vector<8x128xi1>, vector<8x128xf32>
    %c7_i32_14 = arith.constant 7 : i32
    %41 = tpu.dynamic_rotate %0 by %c7_i32_14 dim 0 : vector<8x128xf32>, i32 -> vector<8x128xf32>
    %42 = vector.shape_cast %36 : vector<1x128xf32> to vector<1x128xf32>
    %43 = vector.broadcast %42 : vector<1x128xf32> to vector<8x128xf32>
    %44 = arith.select %34, %43, %41 : vector<8x128xi1>, vector<8x128xf32>
    %45 = vector.extract_strided_slice %4 {offsets = [4, 0], sizes = [1, 128], strides = [1, 1]} : vector<6x128xf32> to vector<1x128xf32>
    %46 = vector.extract_strided_slice %4 {offsets = [5, 0], sizes = [1, 128], strides = [1, 1]} : vector<6x128xf32> to vector<1x128xf32>
    %c1_i32_15 = arith.constant 1 : i32
    %47 = tpu.dynamic_rotate %2 by %c1_i32_15 dim 0 : vector<8x128xf32>, i32 -> vector<8x128xf32>
    %48 = vector.shape_cast %45 : vector<1x128xf32> to vector<1x128xf32>
    %49 = vector.broadcast %48 : vector<1x128xf32> to vector<8x128xf32>
    %50 = arith.select %32, %49, %47 : vector<8x128xi1>, vector<8x128xf32>
    %c7_i32_16 = arith.constant 7 : i32
    %51 = tpu.dynamic_rotate %2 by %c7_i32_16 dim 0 : vector<8x128xf32>, i32 -> vector<8x128xf32>
    %52 = vector.shape_cast %46 : vector<1x128xf32> to vector<1x128xf32>
    %53 = vector.broadcast %52 : vector<1x128xf32> to vector<8x128xf32>
    %54 = arith.select %34, %53, %51 : vector<8x128xi1>, vector<8x128xf32>
    %cst_17 = arith.constant 0.000000e+00 : f32
    %55 = vector.broadcast %cst_17 : f32 to vector<8x128xf32>
    %56 = arith.subf %55, %20 : vector<8x128xf32>
    %57 = vector.broadcast %13 : vector<8x1xf32> to vector<8x128xf32>
    %58 = arith.mulf %57, %40 : vector<8x128xf32>
    %59 = vector.broadcast %14 : vector<8x1xf32> to vector<8x128xf32>
    %60 = arith.mulf %59, %0 : vector<8x128xf32>
    %61 = arith.addf %58, %60 : vector<8x128xf32>
    %62 = vector.broadcast %15 : vector<8x1xf32> to vector<8x128xf32>
    %63 = arith.mulf %62, %44 : vector<8x128xf32>
    %64 = arith.addf %61, %63 : vector<8x128xf32>
    %65 = arith.mulf %56, %64 : vector<8x128xf32>
    %66 = arith.addf %26, %65 : vector<8x128xf32>
    %67 = vector.broadcast %16 : vector<8x1xf32> to vector<8x128xf32>
    %68 = arith.mulf %67, %40 : vector<8x128xf32>
    %69 = vector.broadcast %17 : vector<8x1xf32> to vector<8x128xf32>
    %70 = arith.mulf %69, %0 : vector<8x128xf32>
    %71 = arith.addf %68, %70 : vector<8x128xf32>
    %72 = vector.broadcast %18 : vector<8x1xf32> to vector<8x128xf32>
    %73 = arith.mulf %72, %44 : vector<8x128xf32>
    %74 = arith.addf %71, %73 : vector<8x128xf32>
    %75 = vector.broadcast %11 : vector<1x128xf32> to vector<8x128xf32>
    %76 = arith.mulf %75, %74 : vector<8x128xf32>
    %77 = arith.addf %66, %76 : vector<8x128xf32>
    %cst_18 = arith.constant 0.000000e+00 : f32
    %78 = vector.broadcast %cst_18 : f32 to vector<1x128xf32>
    %79 = arith.subf %78, %8 : vector<1x128xf32>
    %80 = vector.broadcast %13 : vector<8x1xf32> to vector<8x128xf32>
    %81 = arith.mulf %80, %50 : vector<8x128xf32>
    %82 = vector.broadcast %14 : vector<8x1xf32> to vector<8x128xf32>
    %83 = arith.mulf %82, %2 : vector<8x128xf32>
    %84 = arith.addf %81, %83 : vector<8x128xf32>
    %85 = vector.broadcast %15 : vector<8x1xf32> to vector<8x128xf32>
    %86 = arith.mulf %85, %54 : vector<8x128xf32>
    %87 = arith.addf %84, %86 : vector<8x128xf32>
    %88 = vector.broadcast %79 : vector<1x128xf32> to vector<8x128xf32>
    %89 = arith.mulf %88, %87 : vector<8x128xf32>
    %90 = arith.addf %77, %89 : vector<8x128xf32>
    %91 = arith.mulf %2, %0 : vector<8x128xf32>
    %cst_19 = arith.constant 0.000000e+00 : f32
    %92 = vector.broadcast %cst_19 : f32 to vector<1x128xf32>
    %93 = arith.subf %92, %8 : vector<1x128xf32>
    %94 = arith.mulf %50, %40 : vector<8x128xf32>
    %95 = vector.broadcast %13 : vector<8x1xf32> to vector<8x128xf32>
    %96 = arith.mulf %95, %94 : vector<8x128xf32>
    %97 = vector.broadcast %14 : vector<8x1xf32> to vector<8x128xf32>
    %98 = arith.mulf %97, %91 : vector<8x128xf32>
    %99 = arith.addf %96, %98 : vector<8x128xf32>
    %100 = arith.mulf %54, %44 : vector<8x128xf32>
    %101 = vector.broadcast %15 : vector<8x1xf32> to vector<8x128xf32>
    %102 = arith.mulf %101, %100 : vector<8x128xf32>
    %103 = arith.addf %99, %102 : vector<8x128xf32>
    %104 = vector.broadcast %93 : vector<1x128xf32> to vector<8x128xf32>
    %105 = arith.mulf %104, %103 : vector<8x128xf32>
    %106 = vector.broadcast %16 : vector<8x1xf32> to vector<8x128xf32>
    %107 = arith.mulf %106, %50 : vector<8x128xf32>
    %108 = vector.broadcast %17 : vector<8x1xf32> to vector<8x128xf32>
    %109 = arith.mulf %108, %2 : vector<8x128xf32>
    %110 = arith.addf %107, %109 : vector<8x128xf32>
    %111 = vector.broadcast %18 : vector<8x1xf32> to vector<8x128xf32>
    %112 = arith.mulf %111, %54 : vector<8x128xf32>
    %113 = arith.addf %110, %112 : vector<8x128xf32>
    %114 = vector.broadcast %11 : vector<1x128xf32> to vector<8x128xf32>
    %115 = arith.mulf %114, %113 : vector<8x128xf32>
    %116 = arith.addf %105, %115 : vector<8x128xf32>
    %117 = vector.extract_strided_slice %4 {offsets = [2, 0], sizes = [1, 128], strides = [1, 1]} : vector<6x128xf32> to vector<1x128xf32>
    %118 = vector.extract_strided_slice %4 {offsets = [3, 0], sizes = [1, 128], strides = [1, 1]} : vector<6x128xf32> to vector<1x128xf32>
    %c1_i32_20 = arith.constant 1 : i32
    %119 = tpu.dynamic_rotate %1 by %c1_i32_20 dim 0 : vector<8x128xf32>, i32 -> vector<8x128xf32>
    %120 = vector.shape_cast %117 : vector<1x128xf32> to vector<1x128xf32>
    %121 = vector.broadcast %120 : vector<1x128xf32> to vector<8x128xf32>
    %122 = arith.select %32, %121, %119 : vector<8x128xi1>, vector<8x128xf32>
    %c7_i32_21 = arith.constant 7 : i32
    %123 = tpu.dynamic_rotate %1 by %c7_i32_21 dim 0 : vector<8x128xf32>, i32 -> vector<8x128xf32>
    %124 = vector.shape_cast %118 : vector<1x128xf32> to vector<1x128xf32>
    %125 = vector.broadcast %124 : vector<1x128xf32> to vector<8x128xf32>
    %126 = arith.select %34, %125, %123 : vector<8x128xi1>, vector<8x128xf32>
    %cst_22 = arith.constant 0.000000e+00 : f32
    %127 = vector.broadcast %cst_22 : f32 to vector<8x128xf32>
    %128 = arith.subf %127, %20 : vector<8x128xf32>
    %129 = vector.broadcast %13 : vector<8x1xf32> to vector<8x128xf32>
    %130 = arith.mulf %129, %122 : vector<8x128xf32>
    %131 = vector.broadcast %14 : vector<8x1xf32> to vector<8x128xf32>
    %132 = arith.mulf %131, %1 : vector<8x128xf32>
    %133 = arith.addf %130, %132 : vector<8x128xf32>
    %134 = vector.broadcast %15 : vector<8x1xf32> to vector<8x128xf32>
    %135 = arith.mulf %134, %126 : vector<8x128xf32>
    %136 = arith.addf %133, %135 : vector<8x128xf32>
    %137 = arith.mulf %128, %136 : vector<8x128xf32>
    %138 = arith.addf %29, %137 : vector<8x128xf32>
    %139 = vector.broadcast %16 : vector<8x1xf32> to vector<8x128xf32>
    %140 = arith.mulf %139, %122 : vector<8x128xf32>
    %141 = vector.broadcast %17 : vector<8x1xf32> to vector<8x128xf32>
    %142 = arith.mulf %141, %1 : vector<8x128xf32>
    %143 = arith.addf %140, %142 : vector<8x128xf32>
    %144 = vector.broadcast %18 : vector<8x1xf32> to vector<8x128xf32>
    %145 = arith.mulf %144, %126 : vector<8x128xf32>
    %146 = arith.addf %143, %145 : vector<8x128xf32>
    %147 = vector.broadcast %11 : vector<1x128xf32> to vector<8x128xf32>
    %148 = arith.mulf %147, %146 : vector<8x128xf32>
    %149 = arith.addf %138, %148 : vector<8x128xf32>
    %150 = vector.extract_strided_slice %6 {offsets = [0, 0], sizes = [5, 128], strides = [1, 1]} : vector<10x128xf32> to vector<5x128xf32>
    %151 = vector.extract_strided_slice %6 {offsets = [5, 0], sizes = [5, 128], strides = [1, 1]} : vector<10x128xf32> to vector<5x128xf32>
    %c2_i32 = arith.constant 2 : i32
    %152 = tpu.dynamic_rotate %0 by %c2_i32 dim 1 : vector<8x128xf32>, i32 -> vector<8x128xf32>
    %c1_i32_23 = arith.constant 1 : i32
    %153 = tpu.dynamic_rotate %0 by %c1_i32_23 dim 1 : vector<8x128xf32>, i32 -> vector<8x128xf32>
    %c127_i32 = arith.constant 127 : i32
    %154 = tpu.dynamic_rotate %0 by %c127_i32 dim 1 : vector<8x128xf32>, i32 -> vector<8x128xf32>
    %c126_i32 = arith.constant 126 : i32
    %155 = tpu.dynamic_rotate %0 by %c126_i32 dim 1 : vector<8x128xf32>, i32 -> vector<8x128xf32>
    %cst_24 = arith.constant 0.000000e+00 : f32
    %156 = vector.broadcast %cst_24 : f32 to vector<8x128xf32>
    %157 = arith.subf %156, %1 : vector<8x128xf32>
    %158 = vector.extract_strided_slice %150 {offsets = [0, 0], sizes = [1, 128], strides = [1, 1]} : vector<5x128xf32> to vector<1x128xf32>
    %159 = vector.broadcast %158 : vector<1x128xf32> to vector<8x128xf32>
    %160 = arith.mulf %159, %152 : vector<8x128xf32>
    %161 = vector.extract_strided_slice %150 {offsets = [1, 0], sizes = [1, 128], strides = [1, 1]} : vector<5x128xf32> to vector<1x128xf32>
    %162 = vector.broadcast %161 : vector<1x128xf32> to vector<8x128xf32>
    %163 = arith.mulf %162, %153 : vector<8x128xf32>
    %164 = arith.addf %160, %163 : vector<8x128xf32>
    %165 = vector.extract_strided_slice %150 {offsets = [2, 0], sizes = [1, 128], strides = [1, 1]} : vector<5x128xf32> to vector<1x128xf32>
    %166 = vector.broadcast %165 : vector<1x128xf32> to vector<8x128xf32>
    %167 = arith.mulf %166, %0 : vector<8x128xf32>
    %168 = arith.addf %164, %167 : vector<8x128xf32>
    %169 = vector.extract_strided_slice %150 {offsets = [3, 0], sizes = [1, 128], strides = [1, 1]} : vector<5x128xf32> to vector<1x128xf32>
    %170 = vector.broadcast %169 : vector<1x128xf32> to vector<8x128xf32>
    %171 = arith.mulf %170, %154 : vector<8x128xf32>
    %172 = arith.addf %168, %171 : vector<8x128xf32>
    %173 = vector.extract_strided_slice %150 {offsets = [4, 0], sizes = [1, 128], strides = [1, 1]} : vector<5x128xf32> to vector<1x128xf32>
    %174 = vector.broadcast %173 : vector<1x128xf32> to vector<8x128xf32>
    %175 = arith.mulf %174, %155 : vector<8x128xf32>
    %176 = arith.addf %172, %175 : vector<8x128xf32>
    %177 = arith.mulf %157, %176 : vector<8x128xf32>
    %178 = vector.extract_strided_slice %151 {offsets = [0, 0], sizes = [1, 128], strides = [1, 1]} : vector<5x128xf32> to vector<1x128xf32>
    %179 = vector.broadcast %178 : vector<1x128xf32> to vector<8x128xf32>
    %180 = arith.mulf %179, %152 : vector<8x128xf32>
    %181 = vector.extract_strided_slice %151 {offsets = [1, 0], sizes = [1, 128], strides = [1, 1]} : vector<5x128xf32> to vector<1x128xf32>
    %182 = vector.broadcast %181 : vector<1x128xf32> to vector<8x128xf32>
    %183 = arith.mulf %182, %153 : vector<8x128xf32>
    %184 = arith.addf %180, %183 : vector<8x128xf32>
    %185 = vector.extract_strided_slice %151 {offsets = [2, 0], sizes = [1, 128], strides = [1, 1]} : vector<5x128xf32> to vector<1x128xf32>
    %186 = vector.broadcast %185 : vector<1x128xf32> to vector<8x128xf32>
    %187 = arith.mulf %186, %0 : vector<8x128xf32>
    %188 = arith.addf %184, %187 : vector<8x128xf32>
    %189 = vector.extract_strided_slice %151 {offsets = [3, 0], sizes = [1, 128], strides = [1, 1]} : vector<5x128xf32> to vector<1x128xf32>
    %190 = vector.broadcast %189 : vector<1x128xf32> to vector<8x128xf32>
    %191 = arith.mulf %190, %154 : vector<8x128xf32>
    %192 = arith.addf %188, %191 : vector<8x128xf32>
    %193 = vector.extract_strided_slice %151 {offsets = [4, 0], sizes = [1, 128], strides = [1, 1]} : vector<5x128xf32> to vector<1x128xf32>
    %194 = vector.broadcast %193 : vector<1x128xf32> to vector<8x128xf32>
    %195 = arith.mulf %194, %155 : vector<8x128xf32>
    %196 = arith.addf %192, %195 : vector<8x128xf32>
    %197 = arith.addf %177, %196 : vector<8x128xf32>
    %198 = arith.addf %90, %197 : vector<8x128xf32>
    %c2_i32_25 = arith.constant 2 : i32
    %199 = tpu.dynamic_rotate %1 by %c2_i32_25 dim 1 : vector<8x128xf32>, i32 -> vector<8x128xf32>
    %c1_i32_26 = arith.constant 1 : i32
    %200 = tpu.dynamic_rotate %1 by %c1_i32_26 dim 1 : vector<8x128xf32>, i32 -> vector<8x128xf32>
    %c127_i32_27 = arith.constant 127 : i32
    %201 = tpu.dynamic_rotate %1 by %c127_i32_27 dim 1 : vector<8x128xf32>, i32 -> vector<8x128xf32>
    %c126_i32_28 = arith.constant 126 : i32
    %202 = tpu.dynamic_rotate %1 by %c126_i32_28 dim 1 : vector<8x128xf32>, i32 -> vector<8x128xf32>
    %cst_29 = arith.constant 0.000000e+00 : f32
    %203 = vector.broadcast %cst_29 : f32 to vector<8x128xf32>
    %204 = arith.subf %203, %1 : vector<8x128xf32>
    %205 = vector.extract_strided_slice %150 {offsets = [0, 0], sizes = [1, 128], strides = [1, 1]} : vector<5x128xf32> to vector<1x128xf32>
    %206 = vector.broadcast %205 : vector<1x128xf32> to vector<8x128xf32>
    %207 = arith.mulf %206, %199 : vector<8x128xf32>
    %208 = vector.extract_strided_slice %150 {offsets = [1, 0], sizes = [1, 128], strides = [1, 1]} : vector<5x128xf32> to vector<1x128xf32>
    %209 = vector.broadcast %208 : vector<1x128xf32> to vector<8x128xf32>
    %210 = arith.mulf %209, %200 : vector<8x128xf32>
    %211 = arith.addf %207, %210 : vector<8x128xf32>
    %212 = vector.extract_strided_slice %150 {offsets = [2, 0], sizes = [1, 128], strides = [1, 1]} : vector<5x128xf32> to vector<1x128xf32>
    %213 = vector.broadcast %212 : vector<1x128xf32> to vector<8x128xf32>
    %214 = arith.mulf %213, %1 : vector<8x128xf32>
    %215 = arith.addf %211, %214 : vector<8x128xf32>
    %216 = vector.extract_strided_slice %150 {offsets = [3, 0], sizes = [1, 128], strides = [1, 1]} : vector<5x128xf32> to vector<1x128xf32>
    %217 = vector.broadcast %216 : vector<1x128xf32> to vector<8x128xf32>
    %218 = arith.mulf %217, %201 : vector<8x128xf32>
    %219 = arith.addf %215, %218 : vector<8x128xf32>
    %220 = vector.extract_strided_slice %150 {offsets = [4, 0], sizes = [1, 128], strides = [1, 1]} : vector<5x128xf32> to vector<1x128xf32>
    %221 = vector.broadcast %220 : vector<1x128xf32> to vector<8x128xf32>
    %222 = arith.mulf %221, %202 : vector<8x128xf32>
    %223 = arith.addf %219, %222 : vector<8x128xf32>
    %224 = arith.mulf %204, %223 : vector<8x128xf32>
    %225 = vector.extract_strided_slice %151 {offsets = [0, 0], sizes = [1, 128], strides = [1, 1]} : vector<5x128xf32> to vector<1x128xf32>
    %226 = vector.broadcast %225 : vector<1x128xf32> to vector<8x128xf32>
    %227 = arith.mulf %226, %199 : vector<8x128xf32>
    %228 = vector.extract_strided_slice %151 {offsets = [1, 0], sizes = [1, 128], strides = [1, 1]} : vector<5x128xf32> to vector<1x128xf32>
    %229 = vector.broadcast %228 : vector<1x128xf32> to vector<8x128xf32>
    %230 = arith.mulf %229, %200 : vector<8x128xf32>
    %231 = arith.addf %227, %230 : vector<8x128xf32>
    %232 = vector.extract_strided_slice %151 {offsets = [2, 0], sizes = [1, 128], strides = [1, 1]} : vector<5x128xf32> to vector<1x128xf32>
    %233 = vector.broadcast %232 : vector<1x128xf32> to vector<8x128xf32>
    %234 = arith.mulf %233, %1 : vector<8x128xf32>
    %235 = arith.addf %231, %234 : vector<8x128xf32>
    %236 = vector.extract_strided_slice %151 {offsets = [3, 0], sizes = [1, 128], strides = [1, 1]} : vector<5x128xf32> to vector<1x128xf32>
    %237 = vector.broadcast %236 : vector<1x128xf32> to vector<8x128xf32>
    %238 = arith.mulf %237, %201 : vector<8x128xf32>
    %239 = arith.addf %235, %238 : vector<8x128xf32>
    %240 = vector.extract_strided_slice %151 {offsets = [4, 0], sizes = [1, 128], strides = [1, 1]} : vector<5x128xf32> to vector<1x128xf32>
    %241 = vector.broadcast %240 : vector<1x128xf32> to vector<8x128xf32>
    %242 = arith.mulf %241, %202 : vector<8x128xf32>
    %243 = arith.addf %239, %242 : vector<8x128xf32>
    %244 = arith.addf %224, %243 : vector<8x128xf32>
    %245 = arith.addf %149, %244 : vector<8x128xf32>
    %c2_i32_30 = arith.constant 2 : i32
    %246 = tpu.dynamic_rotate %2 by %c2_i32_30 dim 1 : vector<8x128xf32>, i32 -> vector<8x128xf32>
    %c1_i32_31 = arith.constant 1 : i32
    %247 = tpu.dynamic_rotate %2 by %c1_i32_31 dim 1 : vector<8x128xf32>, i32 -> vector<8x128xf32>
    %c127_i32_32 = arith.constant 127 : i32
    %248 = tpu.dynamic_rotate %2 by %c127_i32_32 dim 1 : vector<8x128xf32>, i32 -> vector<8x128xf32>
    %c126_i32_33 = arith.constant 126 : i32
    %249 = tpu.dynamic_rotate %2 by %c126_i32_33 dim 1 : vector<8x128xf32>, i32 -> vector<8x128xf32>
    %250 = vector.extract_strided_slice %150 {offsets = [0, 0], sizes = [1, 128], strides = [1, 1]} : vector<5x128xf32> to vector<1x128xf32>
    %251 = vector.broadcast %250 : vector<1x128xf32> to vector<8x128xf32>
    %252 = arith.mulf %251, %246 : vector<8x128xf32>
    %253 = vector.extract_strided_slice %150 {offsets = [1, 0], sizes = [1, 128], strides = [1, 1]} : vector<5x128xf32> to vector<1x128xf32>
    %254 = vector.broadcast %253 : vector<1x128xf32> to vector<8x128xf32>
    %255 = arith.mulf %254, %247 : vector<8x128xf32>
    %256 = arith.addf %252, %255 : vector<8x128xf32>
    %257 = vector.extract_strided_slice %150 {offsets = [2, 0], sizes = [1, 128], strides = [1, 1]} : vector<5x128xf32> to vector<1x128xf32>
    %258 = vector.broadcast %257 : vector<1x128xf32> to vector<8x128xf32>
    %259 = arith.mulf %258, %2 : vector<8x128xf32>
    %260 = arith.addf %256, %259 : vector<8x128xf32>
    %261 = vector.extract_strided_slice %150 {offsets = [3, 0], sizes = [1, 128], strides = [1, 1]} : vector<5x128xf32> to vector<1x128xf32>
    %262 = vector.broadcast %261 : vector<1x128xf32> to vector<8x128xf32>
    %263 = arith.mulf %262, %248 : vector<8x128xf32>
    %264 = arith.addf %260, %263 : vector<8x128xf32>
    %265 = vector.extract_strided_slice %150 {offsets = [4, 0], sizes = [1, 128], strides = [1, 1]} : vector<5x128xf32> to vector<1x128xf32>
    %266 = vector.broadcast %265 : vector<1x128xf32> to vector<8x128xf32>
    %267 = arith.mulf %266, %249 : vector<8x128xf32>
    %268 = arith.addf %264, %267 : vector<8x128xf32>
    %cst_34 = arith.constant 0.000000e+00 : f32
    %269 = vector.broadcast %cst_34 : f32 to vector<8x128xf32>
    %270 = arith.subf %269, %268 : vector<8x128xf32>
    %271 = arith.addf %245, %270 : vector<8x128xf32>
    %272 = vector.extract_strided_slice %151 {offsets = [0, 0], sizes = [1, 128], strides = [1, 1]} : vector<5x128xf32> to vector<1x128xf32>
    %273 = vector.broadcast %272 : vector<1x128xf32> to vector<8x128xf32>
    %274 = arith.mulf %273, %246 : vector<8x128xf32>
    %275 = vector.extract_strided_slice %151 {offsets = [1, 0], sizes = [1, 128], strides = [1, 1]} : vector<5x128xf32> to vector<1x128xf32>
    %276 = vector.broadcast %275 : vector<1x128xf32> to vector<8x128xf32>
    %277 = arith.mulf %276, %247 : vector<8x128xf32>
    %278 = arith.addf %274, %277 : vector<8x128xf32>
    %279 = vector.extract_strided_slice %151 {offsets = [2, 0], sizes = [1, 128], strides = [1, 1]} : vector<5x128xf32> to vector<1x128xf32>
    %280 = vector.broadcast %279 : vector<1x128xf32> to vector<8x128xf32>
    %281 = arith.mulf %280, %2 : vector<8x128xf32>
    %282 = arith.addf %278, %281 : vector<8x128xf32>
    %283 = vector.extract_strided_slice %151 {offsets = [3, 0], sizes = [1, 128], strides = [1, 1]} : vector<5x128xf32> to vector<1x128xf32>
    %284 = vector.broadcast %283 : vector<1x128xf32> to vector<8x128xf32>
    %285 = arith.mulf %284, %248 : vector<8x128xf32>
    %286 = arith.addf %282, %285 : vector<8x128xf32>
    %287 = vector.extract_strided_slice %151 {offsets = [4, 0], sizes = [1, 128], strides = [1, 1]} : vector<5x128xf32> to vector<1x128xf32>
    %288 = vector.broadcast %287 : vector<1x128xf32> to vector<8x128xf32>
    %289 = arith.mulf %288, %249 : vector<8x128xf32>
    %290 = arith.addf %286, %289 : vector<8x128xf32>
    %291 = arith.addf %116, %290 : vector<8x128xf32>
    %c2_i32_35 = arith.constant 2 : i32
    %292 = tpu.dynamic_rotate %21 by %c2_i32_35 dim 1 : vector<8x128xf32>, i32 -> vector<8x128xf32>
    %c1_i32_36 = arith.constant 1 : i32
    %293 = tpu.dynamic_rotate %21 by %c1_i32_36 dim 1 : vector<8x128xf32>, i32 -> vector<8x128xf32>
    %c127_i32_37 = arith.constant 127 : i32
    %294 = tpu.dynamic_rotate %21 by %c127_i32_37 dim 1 : vector<8x128xf32>, i32 -> vector<8x128xf32>
    %c126_i32_38 = arith.constant 126 : i32
    %295 = tpu.dynamic_rotate %21 by %c126_i32_38 dim 1 : vector<8x128xf32>, i32 -> vector<8x128xf32>
    %296 = vector.extract_strided_slice %150 {offsets = [0, 0], sizes = [1, 128], strides = [1, 1]} : vector<5x128xf32> to vector<1x128xf32>
    %297 = vector.broadcast %296 : vector<1x128xf32> to vector<8x128xf32>
    %298 = arith.mulf %297, %292 : vector<8x128xf32>
    %299 = vector.extract_strided_slice %150 {offsets = [1, 0], sizes = [1, 128], strides = [1, 1]} : vector<5x128xf32> to vector<1x128xf32>
    %300 = vector.broadcast %299 : vector<1x128xf32> to vector<8x128xf32>
    %301 = arith.mulf %300, %293 : vector<8x128xf32>
    %302 = arith.addf %298, %301 : vector<8x128xf32>
    %303 = vector.extract_strided_slice %150 {offsets = [2, 0], sizes = [1, 128], strides = [1, 1]} : vector<5x128xf32> to vector<1x128xf32>
    %304 = vector.broadcast %303 : vector<1x128xf32> to vector<8x128xf32>
    %305 = arith.mulf %304, %21 : vector<8x128xf32>
    %306 = arith.addf %302, %305 : vector<8x128xf32>
    %307 = vector.extract_strided_slice %150 {offsets = [3, 0], sizes = [1, 128], strides = [1, 1]} : vector<5x128xf32> to vector<1x128xf32>
    %308 = vector.broadcast %307 : vector<1x128xf32> to vector<8x128xf32>
    %309 = arith.mulf %308, %294 : vector<8x128xf32>
    %310 = arith.addf %306, %309 : vector<8x128xf32>
    %311 = vector.extract_strided_slice %150 {offsets = [4, 0], sizes = [1, 128], strides = [1, 1]} : vector<5x128xf32> to vector<1x128xf32>
    %312 = vector.broadcast %311 : vector<1x128xf32> to vector<8x128xf32>
    %313 = arith.mulf %312, %295 : vector<8x128xf32>
    %314 = arith.addf %310, %313 : vector<8x128xf32>
    %cst_39 = arith.constant 0.000000e+00 : f32
    %315 = vector.broadcast %cst_39 : f32 to vector<8x128xf32>
    %316 = arith.subf %315, %314 : vector<8x128xf32>
    %317 = arith.addf %291, %316 : vector<8x128xf32>
    %318 = vector.broadcast %12 : vector<1x128xf32> to vector<8x128xf32>
    %319 = arith.mulf %198, %318 : vector<8x128xf32>
    %c0_40 = arith.constant 0 : index
    %c0_41 = arith.constant 0 : index
    %c0_42 = arith.constant 0 : index
    %320 = vector.load %arg8[%c0_40, %c0_41, %c0_42] : memref<3x8x128xf32, #tpu.memory_space<vmem>>, vector<1x8x128xf32>
    %321 = vector.shape_cast %320 : vector<1x8x128xf32> to vector<8x128xf32>
    %322 = vector.shape_cast %319 : vector<8x128xf32> to vector<1x8x128xf32>
    tpu.vector_store %arg8[%c0_40, %c0_41, %c0_42], %322 {strides = array<i32>} : memref<3x8x128xf32, #tpu.memory_space<vmem>>, vector<1x8x128xf32>,
    %323 = vector.broadcast %12 : vector<1x128xf32> to vector<8x128xf32>
    %324 = arith.mulf %271, %323 : vector<8x128xf32>
    %c1 = arith.constant 1 : index
    %c0_43 = arith.constant 0 : index
    %c0_44 = arith.constant 0 : index
    %325 = vector.load %arg8[%c1, %c0_43, %c0_44] : memref<3x8x128xf32, #tpu.memory_space<vmem>>, vector<1x8x128xf32>
    %326 = vector.shape_cast %325 : vector<1x8x128xf32> to vector<8x128xf32>
    %327 = vector.shape_cast %324 : vector<8x128xf32> to vector<1x8x128xf32>
    tpu.vector_store %arg8[%c1, %c0_43, %c0_44], %327 {strides = array<i32>} : memref<3x8x128xf32, #tpu.memory_space<vmem>>, vector<1x8x128xf32>,
    %c2 = arith.constant 2 : index
    %c0_45 = arith.constant 0 : index
    %c0_46 = arith.constant 0 : index
    %328 = vector.load %arg8[%c2, %c0_45, %c0_46] : memref<3x8x128xf32, #tpu.memory_space<vmem>>, vector<1x8x128xf32>
    %329 = vector.shape_cast %328 : vector<1x8x128xf32> to vector<8x128xf32>
    %330 = vector.shape_cast %317 : vector<8x128xf32> to vector<1x8x128xf32>
    tpu.vector_store %arg8[%c2, %c0_45, %c0_46], %330 {strides = array<i32>} : memref<3x8x128xf32, #tpu.memory_space<vmem>>, vector<1x8x128xf32>,
    return
  }
  func.func @transform_0(%arg0: i32) -> (i32, i32) {
    %c0_i32 = arith.constant 0 : i32
    %c0_i32_0 = arith.constant 0 : i32
    return %arg0, %c0_i32 : i32, i32
  }
  func.func @transform_1(%arg0: i32) -> (i32, i32) {
    %c0_i32 = arith.constant 0 : i32
    %c0_i32_0 = arith.constant 0 : i32
    return %arg0, %c0_i32 : i32, i32
  }
  func.func @transform_2(%arg0: i32) -> (i32, i32) {
    %c0_i32 = arith.constant 0 : i32
    %c0_i32_0 = arith.constant 0 : i32
    return %arg0, %c0_i32 : i32, i32
  }
  func.func @transform_3(%arg0: i32) -> (i32, i32, i32) {
    %c0_i32 = arith.constant 0 : i32
    %c0_i32_0 = arith.constant 0 : i32
    %c0_i32_1 = arith.constant 0 : i32
    return %arg0, %c0_i32, %c0_i32_0 : i32, i32, i32
  }
  func.func @transform_4(%arg0: i32) -> (i32, i32) {
    %c0_i32 = arith.constant 0 : i32
    %c0_i32_0 = arith.constant 0 : i32
    return %arg0, %c0_i32 : i32, i32
  }
  func.func @transform_5(%arg0: i32) -> (i32, i32) {
    %c0_i32 = arith.constant 0 : i32
    %c0_i32_0 = arith.constant 0 : i32
    %c0_i32_1 = arith.constant 0 : i32
    return %c0_i32, %c0_i32_0 : i32, i32
  }
  func.func @transform_6(%arg0: i32) -> (i32, i32) {
    %c0_i32 = arith.constant 0 : i32
    %c0_i32_0 = arith.constant 0 : i32
    %c0_i32_1 = arith.constant 0 : i32
    return %c0_i32, %c0_i32_0 : i32, i32
  }
  func.func @transform_7(%arg0: i32) -> (i32, i32, i32) {
    %c0_i32 = arith.constant 0 : i32
    %c0_i32_0 = arith.constant 0 : i32
    %c0_i32_1 = arith.constant 0 : i32
    return %c0_i32, %arg0, %c0_i32_0 : i32, i32, i32
  }
}

</mosaic_0001>

<llo_original>
// kernel: _forward.1
$region0: #{_forward.1}
  #allocation0 [shape = 'u32[]', space=smem, size = 0x4, offset = 0x4, fixed_abs, tag = 'smem constant byte address 0x4 - core index']
  #allocation1 [shape = 'u32[72,128]{1,0:T(1,128)}', space=vmem, size = 0x9000, scoped, tag = 'internal scratch']
  %s0 = inlined_call_operand.vmem [shape: f32[32,128], index: 0, kind: input, shape index: {}]
  %s1 = inlined_call_operand.vmem [shape: f32[32,128], index: 1, kind: input, shape index: {}]
  %s2 = inlined_call_operand.vmem [shape: f32[32,128], index: 2, kind: input, shape index: {}]
  %s3 = inlined_call_operand.vmem [shape: f32[4,6,128], index: 3, kind: input, shape index: {}]
  %s4 = inlined_call_operand.vmem [shape: f32[32,6], index: 4, kind: input, shape index: {}]
  %s5 = inlined_call_operand.vmem [shape: f32[10,128], index: 5, kind: input, shape index: {}]
  %s6 = inlined_call_operand.vmem [shape: f32[5,128], index: 6, kind: input, shape index: {}]
  %s7 = inlined_call_operand.hbm [shape: f32[3,32,128], index: 7, kind: output, shape index: {}]
  %s8 = sld [smem:[#allocation0]]
  $region61: #{_forward.1} parent=0
    _
  %s10 = ssub.s32 1, %s8
  %s11 = scalar_select 0, %s10, %s8
  $region1: #{_forward.1} parent=0
    #allocation2 [shape = 'u8[24576]{0}', space=vmem, size = 0x6000, scoped, tag = 'output window, operand 0']
    #allocation3 [shape = 's32[2]{0}', space=sflag, size = 0x8, scoped, tag = 'scoped memory for _forward.1']
    %12 = vsyncpa [#allocation3], 0
    %s13 = scalar_lea.sflag [#allocation3], 1
    %14 = vsyncpa %s13, 0
    loop: start=0, step=1, limit=6
    $region2: #{_forward.1} parent=1 // loop_pre_header
      _
    $region3: #{_forward.1} parent=1 // loop_header
      %s16 = sphi 0, %s20
      %p17 = scmp.ge.s32.totalorder %s16, 6
      %s26 = sphi 0, %s28
      %s29 = sphi 0, %s26
      %s30 = sphi 0, %s29
      %s46 = sphi 0, %s30
      %s52 = sphi 0, %s54
      %s55 = sphi 0, %s52
      %s56 = sphi 0, %s55
      %s72 = sphi 0, %s56
      %s78 = sphi 0, %s80
      %s81 = sphi 0, %s78
      %s82 = sphi 0, %s81
      %s98 = sphi 0, %s82
      %s104 = sphi 0, %s106
      %s107 = sphi 0, %s104
      %s108 = sphi 0, %s107
      %s124 = sphi 0, %s108
      %s130 = sphi 0, %s132
      %s133 = sphi 0, %s130
      %s134 = sphi 0, %s133
      %s150 = sphi 0, %s134
      %s154 = sphi 0, %s154
      %s156 = sphi 0, %s154
      %s157 = sphi 0, %s156
      %s171 = sphi 0, %s157
      %s175 = sphi 0, %s175
      %s177 = sphi 0, %s175
      %s178 = sphi 0, %s177
      %s192 = sphi 0, %s178
      %s198 = sphi 0, %s200
      %s201 = sphi 0, %s198
      %s202 = sphi 0, %s201
      %s218 = sphi 0, %s202
    $region4: #{_forward.1} parent=1 // loop_header_branch
      %19 = sbr.rel (%p17) target = $region8
    $region5: #{_forward.1} parent=1 // loop_body
      %s21 = ssub.s32 %s16, 1
      %s22 = ssub.s32 %s16, 2
      %s23 = sadd.s32 %s16, 1
      %s24 = ssub.s32 %s16, %s23
      %p25 = scmp.eq.s32.totalorder %s24, 0
      %s27 = sadd.s32 %s26, 1
      %s28 = scalar_select %p25, %s26, %s27
      %p31 = pneg %p25
      %p32 = scmp.eq.s32.totalorder %s16, 3
      %p33 = por %p31, %p32
      %p34 = scmp.ne.s32.totalorder %s26, %s29
      %p35 = scmp.eq.s32.totalorder %s16, 0
      %p36 = por %p34, %p35
      %p37 = scmp.ne.s32.totalorder %s26, %s29
      %p38 = scmp.eq.s32.totalorder %s21, 3
      %p39 = por %p37, %p38
      %p40 = scmp.ne.s32.totalorder %s29, %s30
      %p41 = scmp.eq.s32.totalorder %s21, 0
      %p42 = por %p40, %p41
      %p43 = scmp.ne.s32.totalorder %s29, %s30
      %p44 = scmp.eq.s32.totalorder %s22, 3
      %p45 = por %p43, %p44
      %p47 = scmp.ne.s32.totalorder %s30, %s46
      %p48 = scmp.eq.s32.totalorder %s22, 0
      %p49 = por %p47, %p48
      %s50 = ssub.s32 %s16, %s23
      %p51 = scmp.eq.s32.totalorder %s50, 0
      %s53 = sadd.s32 %s52, 1
      %s54 = scalar_select %p51, %s52, %s53
      %p57 = pneg %p51
      %p58 = scmp.eq.s32.totalorder %s16, 3
      %p59 = por %p57, %p58
      %p60 = scmp.ne.s32.totalorder %s52, %s55
      %p61 = scmp.eq.s32.totalorder %s16, 0
      %p62 = por %p60, %p61
      %p63 = scmp.ne.s32.totalorder %s52, %s55
      %p64 = scmp.eq.s32.totalorder %s21, 3
      %p65 = por %p63, %p64
      %p66 = scmp.ne.s32.totalorder %s55, %s56
      %p67 = scmp.eq.s32.totalorder %s21, 0
      %p68 = por %p66, %p67
      %p69 = scmp.ne.s32.totalorder %s55, %s56
      %p70 = scmp.eq.s32.totalorder %s22, 3
      %p71 = por %p69, %p70
      %p73 = scmp.ne.s32.totalorder %s56, %s72
      %p74 = scmp.eq.s32.totalorder %s22, 0
      %p75 = por %p73, %p74
      %s76 = ssub.s32 %s16, %s23
      %p77 = scmp.eq.s32.totalorder %s76, 0
      %s79 = sadd.s32 %s78, 1
      %s80 = scalar_select %p77, %s78, %s79
      %p83 = pneg %p77
      %p84 = scmp.eq.s32.totalorder %s16, 3
      %p85 = por %p83, %p84
      %p86 = scmp.ne.s32.totalorder %s78, %s81
      %p87 = scmp.eq.s32.totalorder %s16, 0
      %p88 = por %p86, %p87
      %p89 = scmp.ne.s32.totalorder %s78, %s81
      %p90 = scmp.eq.s32.totalorder %s21, 3
      %p91 = por %p89, %p90
      %p92 = scmp.ne.s32.totalorder %s81, %s82
      %p93 = scmp.eq.s32.totalorder %s21, 0
      %p94 = por %p92, %p93
      %p95 = scmp.ne.s32.totalorder %s81, %s82
      %p96 = scmp.eq.s32.totalorder %s22, 3
      %p97 = por %p95, %p96
      %p99 = scmp.ne.s32.totalorder %s82, %s98
      %p100 = scmp.eq.s32.totalorder %s22, 0
      %p101 = por %p99, %p100
      %s102 = ssub.s32 %s16, %s23
      %p103 = scmp.eq.s32.totalorder %s102, 0
      %s105 = sadd.s32 %s104, 1
      %s106 = scalar_select %p103, %s104, %s105
      %p109 = pneg %p103
      %p110 = scmp.eq.s32.totalorder %s16, 3
      %p111 = por %p109, %p110
      %p112 = scmp.ne.s32.totalorder %s104, %s107
      %p113 = scmp.eq.s32.totalorder %s16, 0
      %p114 = por %p112, %p113
      %p115 = scmp.ne.s32.totalorder %s104, %s107
      %p116 = scmp.eq.s32.totalorder %s21, 3
      %p117 = por %p115, %p116
      %p118 = scmp.ne.s32.totalorder %s107, %s108
      %p119 = scmp.eq.s32.totalorder %s21, 0
      %p120 = por %p118, %p119
      %p121 = scmp.ne.s32.totalorder %s107, %s108
      %p122 = scmp.eq.s32.totalorder %s22, 3
      %p123 = por %p121, %p122
      %p125 = scmp.ne.s32.totalorder %s108, %s124
      %p126 = scmp.eq.s32.totalorder %s22, 0
      %p127 = por %p125, %p126
      %s128 = ssub.s32 %s16, %s23
      %p129 = scmp.eq.s32.totalorder %s128, 0
      %s131 = sadd.s32 %s130, 1
      %s132 = scalar_select %p129, %s130, %s131
      %p135 = pneg %p129
      %p136 = scmp.eq.s32.totalorder %s16, 3
      %p137 = por %p135, %p136
      %p138 = scmp.ne.s32.totalorder %s130, %s133
      %p139 = scmp.eq.s32.totalorder %s16, 0
      %p140 = por %p138, %p139
      %p141 = scmp.ne.s32.totalorder %s130, %s133
      %p142 = scmp.eq.s32.totalorder %s21, 3
      %p143 = por %p141, %p142
      %p144 = scmp.ne.s32.totalorder %s133, %s134
      %p145 = scmp.eq.s32.totalorder %s21, 0
      %p146 = por %p144, %p145
      %p147 = scmp.ne.s32.totalorder %s133, %s134
      %p148 = scmp.eq.s32.totalorder %s22, 3
      %p149 = por %p147, %p148
      %p151 = scmp.ne.s32.totalorder %s134, %s150
      %p152 = scmp.eq.s32.totalorder %s22, 0
      %p153 = por %p151, %p152
      %s155 = sadd.s32 %s154, 1
      %p158 = scmp.eq.s32.totalorder %s16, 3
      %p159 = scmp.ne.s32.totalorder %s154, %s156
      %p160 = scmp.eq.s32.totalorder %s16, 0
      %p161 = por %p159, %p160
      %p162 = scmp.ne.s32.totalorder %s154, %s156
      %p163 = scmp.eq.s32.totalorder %s21, 3
      %p164 = por %p162, %p163
      %p165 = scmp.ne.s32.totalorder %s156, %s157
      %p166 = scmp.eq.s32.totalorder %s21, 0
      %p167 = por %p165, %p166
      %p168 = scmp.ne.s32.totalorder %s156, %s157
      %p169 = scmp.eq.s32.totalorder %s22, 3
      %p170 = por %p168, %p169
      %p172 = scmp.ne.s32.totalorder %s157, %s171
      %p173 = scmp.eq.s32.totalorder %s22, 0
      %p174 = por %p172, %p173
      %s176 = sadd.s32 %s175, 1
      %p179 = scmp.eq.s32.totalorder %s16, 3
      %p180 = scmp.ne.s32.totalorder %s175, %s177
      %p181 = scmp.eq.s32.totalorder %s16, 0
      %p182 = por %p180, %p181
      %p183 = scmp.ne.s32.totalorder %s175, %s177
      %p184 = scmp.eq.s32.totalorder %s21, 3
      %p185 = por %p183, %p184
      %p186 = scmp.ne.s32.totalorder %s177, %s178
      %p187 = scmp.eq.s32.totalorder %s21, 0
      %p188 = por %p186, %p187
      %p189 = scmp.ne.s32.totalorder %s177, %s178
      %p190 = scmp.eq.s32.totalorder %s22, 3
      %p191 = por %p189, %p190
      %p193 = scmp.ne.s32.totalorder %s178, %s192
      %p194 = scmp.eq.s32.totalorder %s22, 0
      %p195 = por %p193, %p194
      %s196 = ssub.s32 %s16, %s23
      %p197 = scmp.eq.s32.totalorder %s196, 0
      %s199 = sadd.s32 %s198, 1
      %s200 = scalar_select %p197, %s198, %s199
      %p203 = pneg %p197
      %p204 = scmp.eq.s32.totalorder %s16, 3
      %p205 = por %p203, %p204
      %p206 = scmp.ne.s32.totalorder %s198, %s201
      %p207 = scmp.eq.s32.totalorder %s16, 0
      %p208 = por %p206, %p207
      %p209 = scmp.ne.s32.totalorder %s198, %s201
      %p210 = scmp.eq.s32.totalorder %s21, 3
      %p211 = por %p209, %p210
      %p212 = scmp.ne.s32.totalorder %s201, %s202
      %p213 = scmp.eq.s32.totalorder %s21, 0
      %p214 = por %p212, %p213
      %p215 = scmp.ne.s32.totalorder %s201, %s202
      %p216 = scmp.eq.s32.totalorder %s22, 3
      %p217 = por %p215, %p216
      %p219 = scmp.ne.s32.totalorder %s202, %s218
      %p220 = scmp.eq.s32.totalorder %s22, 0
      %p221 = por %p219, %p220
      %p222 = scmp.le.s32.totalorder 1, %s16
      %p223 = scmp.lt.s32.totalorder %s16, 5
      %p224 = pnand %p222, %p223
      %p225 = pneg %p224
      // Predicated region
      $region9: #{_forward.1} parent=5 // pred_check
        _
      $region10: #{_forward.1} parent=5 // pred_check_branch
        %227 = sbr.rel (%p224) target = $region12
      $region11: #{_forward.1} parent=5 // pred_region
        %s228 = ssub.s32 %s16, 1
        // Predicated region
        $region13: #{_forward.1} parent=11 // pred_check
          %p229 = pneg %p167
        $region14: #{_forward.1} parent=11 // pred_check_branch
          %231 = sbr.rel (%p229) target = $region16
        $region15: #{_forward.1} parent=11 // pred_region
          _
        $region16: #{_forward.1} parent=11 // pred_fallthru
          _
        // Predicated region
        $region17: #{_forward.1} parent=11 // pred_check
          %p232 = pneg %p188
        $region18: #{_forward.1} parent=11 // pred_check_branch
          %234 = sbr.rel (%p232) target = $region20
        $region19: #{_forward.1} parent=11 // pred_region
          _
        $region20: #{_forward.1} parent=11 // pred_fallthru
          _
      $region12: #{_forward.1} parent=5 // pred_fallthru
        _
      %p235 = scmp.lt.s32.totalorder %s16, 4
      // Predicated region
      $region21: #{_forward.1} parent=5 // pred_check
        %p236 = pneg %p235
      $region22: #{_forward.1} parent=5 // pred_check_branch
        %238 = sbr.rel (%p236) target = $region24
      $region23: #{_forward.1} parent=5 // pred_region
        // Predicated region
        $region25: #{_forward.1} parent=23 // pred_check
          %p239 = pneg %p36
        $region26: #{_forward.1} parent=23 // pred_check_branch
          %241 = sbr.rel (%p239) target = $region28
        $region27: #{_forward.1} parent=23 // pred_region
          %p242 = scmp.lt.s32.totalorder %s16, 3
          %s243 = scalar_select %p242, %s16, 3
          %s244 = smul.addr %s243, 8
          %s245 = scalar_lea.vmem %s0, %s244
        $region28: #{_forward.1} parent=23 // pred_fallthru
          _
        // Predicated region
        $region29: #{_forward.1} parent=23 // pred_check
          %p246 = pneg %p62
        $region30: #{_forward.1} parent=23 // pred_check_branch
          %248 = sbr.rel (%p246) target = $region32
        $region31: #{_forward.1} parent=23 // pred_region
          %p249 = scmp.lt.s32.totalorder %s16, 3
          %s250 = scalar_select %p249, %s16, 3
          %s251 = smul.addr %s250, 8
          %s252 = scalar_lea.vmem %s1, %s251
        $region32: #{_forward.1} parent=23 // pred_fallthru
          _
        // Predicated region
        $region33: #{_forward.1} parent=23 // pred_check
          %p253 = pneg %p88
        $region34: #{_forward.1} parent=23 // pred_check_branch
          %255 = sbr.rel (%p253) target = $region36
        $region35: #{_forward.1} parent=23 // pred_region
          %p256 = scmp.lt.s32.totalorder %s16, 3
          %s257 = scalar_select %p256, %s16, 3
          %s258 = smul.addr %s257, 8
          %s259 = scalar_lea.vmem %s2, %s258
        $region36: #{_forward.1} parent=23 // pred_fallthru
          _
        // Predicated region
        $region37: #{_forward.1} parent=23 // pred_check
          %p260 = pneg %p114
        $region38: #{_forward.1} parent=23 // pred_check_branch
          %262 = sbr.rel (%p260) target = $region40
        $region39: #{_forward.1} parent=23 // pred_region
          %p263 = scmp.lt.s32.totalorder %s16, 3
          %s264 = scalar_select %p263, %s16, 3
          %s265 = smul.addr %s264, 8
          %s266 = scalar_lea.vmem %s3, %s265
        $region40: #{_forward.1} parent=23 // pred_fallthru
          _
        // Predicated region
        $region41: #{_forward.1} parent=23 // pred_check
          %p267 = pneg %p140
        $region42: #{_forward.1} parent=23 // pred_check_branch
          %269 = sbr.rel (%p267) target = $region44
        $region43: #{_forward.1} parent=23 // pred_region
          %p270 = scmp.lt.s32.totalorder %s16, 3
          %s271 = scalar_select %p270, %s16, 3
          %s272 = smul.addr %s271, 8
          %s273 = scalar_lea.vmem %s4, %s272
        $region44: #{_forward.1} parent=23 // pred_fallthru
          _
      $region24: #{_forward.1} parent=5 // pred_fallthru
        _
      %p274 = scmp.le.s32.totalorder 1, %s16
      %p275 = scmp.lt.s32.totalorder %s16, 5
      %p276 = pnand %p274, %p275
      %p277 = pneg %p276
      // Predicated region
      $region45: #{_forward.1} parent=5 // pred_check
        _
      $region46: #{_forward.1} parent=5 // pred_check_branch
        %279 = sbr.rel (%p276) target = $region48
      $region47: #{_forward.1} parent=5 // pred_region
        %s280 = ssub.s32 %s16, 1
        %p281 = scmp.lt.s32.totalorder %s21, 3
        %s282 = scalar_select %p281, %s21, 3
        %s283 = smul.addr %s282, 8
        %s284 = scalar_lea.vmem %s0, %s283
        %p285 = pneg %p42
        %p286 = pneg %p39
        %p287 = scmp.lt.s32.totalorder %s21, 3
        %s288 = scalar_select %p287, %s21, 3
        %s289 = smul.addr %s288, 8
        %s290 = scalar_lea.vmem %s1, %s289
        %p291 = pneg %p68
        %p292 = pneg %p65
        %p293 = scmp.lt.s32.totalorder %s21, 3
        %s294 = scalar_select %p293, %s21, 3
        %s295 = smul.addr %s294, 8
        %s296 = scalar_lea.vmem %s2, %s295
        %p297 = pneg %p94
        %p298 = pneg %p91
        %p299 = scmp.lt.s32.totalorder %s21, 3
        %s300 = scalar_select %p299, %s21, 3
        %s301 = smul.addr %s300, 8
        %s302 = scalar_lea.vmem %s3, %s301
        %p303 = pneg %p120
        %p304 = pneg %p117
        %p305 = scmp.lt.s32.totalorder %s21, 3
        %s306 = scalar_select %p305, %s21, 3
        %s307 = smul.addr %s306, 8
        %s308 = scalar_lea.vmem %s4, %s307
        %p309 = pneg %p146
        %p310 = pneg %p143
        %p311 = pneg %p167
        %p312 = pneg %p164
        %p313 = pneg %p188
        %p314 = pneg %p185
        %p315 = pneg %p214
        %p316 = pneg %p211
        %s317 = sand.u32 %s201, 1
        %s318 = scalar_lea.sflag [#allocation3], %s317
        %s319 = sand.u32 %s201, 1
        %s320 = smul.addr %s319, 24
        %s321 = scalar_lea.vmem [#allocation2], %s320
        %p322 = scmp.lt.s32.totalorder %s21, 3
        %s323 = scalar_select %p322, %s21, 3
        %s324 = smul.addr %s323, 8
        %s325 = scalar_lea.vmem %s0, %s324
        %p326 = scmp.lt.s32.totalorder %s21, 3
        %s327 = scalar_select %p326, %s21, 3
        %s328 = smul.addr %s327, 8
        %s329 = scalar_lea.vmem %s1, %s328
        %p330 = scmp.lt.s32.totalorder %s21, 3
        %s331 = scalar_select %p330, %s21, 3
        %s332 = smul.addr %s331, 8
        %s333 = scalar_lea.vmem %s2, %s332
        %p334 = scmp.lt.s32.totalorder %s21, 3
        %s335 = scalar_select %p334, %s21, 3
        %s336 = smul.addr %s335, 8
        %s337 = scalar_lea.vmem %s3, %s336
        %p338 = scmp.lt.s32.totalorder %s21, 3
        %s339 = scalar_select %p338, %s21, 3
        %s340 = smul.addr %s339, 8
        %s341 = scalar_lea.vmem %s4, %s340
        %v342 = vld [vmem:[%s325] sm:$0xff]
        %v343 = vld [vmem:[%s329] sm:$0xff]
        %v344 = vld [vmem:[%s333] sm:$0xff]
        %v345 = vld [vmem:[%s337] sm:$0x3f]
        %v346 = vld [vmem:[%s341] sm:$0xff]
        %v347 = vld [vmem:[%s5] sm:$0xff]
        %v348 = vld [vmem:[%s5 + $0x8] sm:$0x3]
        %v349 = vld [vmem:[%s6] sm:$0x1f]
        %v350 = vperm.slane %v349, 0
        %v351 = vmul.f32 %v350, %v342
        %v352 = vmul.f32 %v344, %v343
        %v353 = vperm.slane %v349, 1
        %v354 = vmul.f32 %v342, %v353
        %v355 = vperm.slane %v349, 2
        %v356 = vsub.f32 %v355, %v354
        %v357 = vmul.f32 %v356, %v343
        %v358 = vsub.f32 0.0, %v356
        %v359 = vmul.f32 %v358, %v342
        %v360 = vlaneseq
        %v361 = vshrl.u32 %v360, 7
        %vm362 = vcmp.eq.s32.totalorder %v361, 0
        %vm363 = vcmp.eq.s32.totalorder %v361, 7
        %v364 = vrot.slane %v342, 7
        %v365 = vperm.slane %v345, 0
        %v366 = vsel %vm362, %v365, %v364
        %v367 = vrot.slane %v342, 1
        %v368 = vperm.slane %v345, 1
        %v369 = vsel %vm363, %v368, %v367
        %v370 = vrot.slane %v344, 7
        %v371 = vperm.slane %v345, 4
        %v372 = vsel %vm362, %v371, %v370
        %v373 = vrot.slane %v344, 1
        %v374 = vperm.slane %v345, 5
        %v375 = vsel %vm363, %v374, %v373
        %v376 = vsub.f32 0.0, %v351
        %378 = vset.pattern.permute.xlu0 0
        %379 = vperm.xlu0 %378, %v346
        %v380 = vpop.permute.xlu0 %379
        %v382 = vmul.f32 %v380, %v366
        %383 = vset.pattern.permute.xlu0 1
        %384 = vperm.xlu0 %383, %v346
        %v385 = vpop.permute.xlu0 %384
        %v387 = vmul.f32 %v385, %v342
        %v388 = vadd.f32 %v382, %v387
        %389 = vset.pattern.permute.xlu0 2
        %390 = vperm.xlu0 %389, %v346
        %v391 = vpop.permute.xlu0 %390
        %v393 = vmul.f32 %v391, %v369
        %v394 = vadd.f32 %v388, %v393
        %v395 = vmul.f32 %v376, %v394
        %v396 = vadd.f32 %v357, %v395
        %397 = vset.pattern.permute.xlu0 3
        %398 = vperm.xlu0 %397, %v346
        %v399 = vpop.permute.xlu0 %398
        %v401 = vmul.f32 %v399, %v366
        %402 = vset.pattern.permute.xlu0 4
        %403 = vperm.xlu0 %402, %v346
        %v404 = vpop.permute.xlu0 %403
        %v406 = vmul.f32 %v404, %v342
        %v407 = vadd.f32 %v401, %v406
        %408 = vset.pattern.permute.xlu0 5
        %409 = vperm.xlu0 %408, %v346
        %v410 = vpop.permute.xlu0 %409
        %v412 = vmul.f32 %v410, %v369
        %v413 = vadd.f32 %v407, %v412
        %v414 = vperm.slane %v349, 3
        %v415 = vmul.f32 %v414, %v413
        %v416 = vadd.f32 %v396, %v415
        %v417 = vsub.f32 0.0, %v349
        %v418 = vmul.f32 %v380, %v372
        %v419 = vmul.f32 %v385, %v344
        %v420 = vadd.f32 %v418, %v419
        %v421 = vmul.f32 %v391, %v375
        %v422 = vadd.f32 %v420, %v421
        %v423 = vperm.slane %v417, 0
        %v424 = vmul.f32 %v423, %v422
        %v425 = vadd.f32 %v416, %v424
        %v426 = vmul.f32 %v344, %v342
        %v427 = vmul.f32 %v372, %v366
        %v428 = vmul.f32 %v380, %v427
        %v429 = vmul.f32 %v385, %v426
        %v430 = vadd.f32 %v428, %v429
        %v431 = vmul.f32 %v375, %v369
        %v432 = vmul.f32 %v391, %v431
        %v433 = vadd.f32 %v430, %v432
        %v434 = vmul.f32 %v423, %v433
        %v435 = vmul.f32 %v399, %v372
        %v436 = vmul.f32 %v404, %v344
        %v437 = vadd.f32 %v435, %v436
        %v438 = vmul.f32 %v410, %v375
        %v439 = vadd.f32 %v437, %v438
        %v440 = vmul.f32 %v414, %v439
        %v441 = vadd.f32 %v434, %v440
        %v442 = vrot.slane %v343, 7
        %v443 = vperm.slane %v345, 2
        %v444 = vsel %vm362, %v443, %v442
        %v445 = vrot.slane %v343, 1
        %v446 = vperm.slane %v345, 3
        %v447 = vsel %vm363, %v446, %v445
        %v448 = vmul.f32 %v380, %v444
        %v449 = vmul.f32 %v385, %v343
        %v450 = vadd.f32 %v448, %v449
        %v451 = vmul.f32 %v391, %v447
        %v452 = vadd.f32 %v450, %v451
        %v453 = vmul.f32 %v376, %v452
        %v454 = vadd.f32 %v359, %v453
        %v455 = vmul.f32 %v399, %v444
        %v456 = vmul.f32 %v404, %v343
        %v457 = vadd.f32 %v455, %v456
        %v458 = vmul.f32 %v410, %v447
        %v459 = vadd.f32 %v457, %v458
        %v460 = vmul.f32 %v414, %v459
        %v461 = vadd.f32 %v454, %v460
        %462 = vrot.lane.b32.xlu0 %v342, 2
        %v463 = vpop.permute.xlu0 %462
        %464 = vrot.lane.b32.xlu0 %v342, 1
        %v465 = vpop.permute.xlu0 %464
        %466 = vrot.lane.b32.xlu0 %v342, 127
        %v467 = vpop.permute.xlu0 %466
        %468 = vrot.lane.b32.xlu0 %v342, 126
        %v469 = vpop.permute.xlu0 %468
        %v470 = vsub.f32 0.0, %v343
        %v471 = vperm.slane %v347, 0
        %v472 = vmul.f32 %v471, %v463
        %v473 = vperm.slane %v347, 1
        %v474 = vmul.f32 %v473, %v465
        %v475 = vadd.f32 %v472, %v474
        %v476 = vperm.slane %v347, 2
        %v477 = vmul.f32 %v476, %v342
        %v478 = vadd.f32 %v475, %v477
        %v479 = vperm.slane %v347, 3
        %v480 = vmul.f32 %v479, %v467
        %v481 = vadd.f32 %v478, %v480
        %v482 = vperm.slane %v347, 4
        %v483 = vmul.f32 %v482, %v469
        %v484 = vadd.f32 %v481, %v483
        %v485 = vmul.f32 %v470, %v484
        %v486 = vperm.slane %v347, 5
        %v487 = vmul.f32 %v486, %v463
        %v488 = vperm.slane %v347, 6
        %v489 = vmul.f32 %v488, %v465
        %v490 = vadd.f32 %v487, %v489
        %v491 = vperm.slane %v347, 7
        %v492 = vmul.f32 %v491, %v342
        %v493 = vadd.f32 %v490, %v492
        %v494 = vperm.slane %v348, 0
        %v495 = vmul.f32 %v494, %v467
        %v496 = vadd.f32 %v493, %v495
        %v497 = vperm.slane %v348, 1
        %v498 = vmul.f32 %v497, %v469
        %v499 = vadd.f32 %v496, %v498
        %v500 = vadd.f32 %v485, %v499
        %v501 = vadd.f32 %v425, %v500
        %502 = vrot.lane.b32.xlu0 %v343, 2
        %v503 = vpop.permute.xlu0 %502
        %504 = vrot.lane.b32.xlu0 %v343, 1
        %v505 = vpop.permute.xlu0 %504
        %506 = vrot.lane.b32.xlu0 %v343, 127
        %v507 = vpop.permute.xlu0 %506
        %508 = vrot.lane.b32.xlu0 %v343, 126
        %v509 = vpop.permute.xlu0 %508
        %v510 = vmul.f32 %v471, %v503
        %v511 = vmul.f32 %v473, %v505
        %v512 = vadd.f32 %v510, %v511
        %v513 = vmul.f32 %v476, %v343
        %v514 = vadd.f32 %v512, %v513
        %v515 = vmul.f32 %v479, %v507
        %v516 = vadd.f32 %v514, %v515
        %v517 = vmul.f32 %v482, %v509
        %v518 = vadd.f32 %v516, %v517
        %v519 = vmul.f32 %v470, %v518
        %v520 = vmul.f32 %v486, %v503
        %v521 = vmul.f32 %v488, %v505
        %v522 = vadd.f32 %v520, %v521
        %v523 = vmul.f32 %v491, %v343
        %v524 = vadd.f32 %v522, %v523
        %v525 = vmul.f32 %v494, %v507
        %v526 = vadd.f32 %v524, %v525
        %v527 = vmul.f32 %v497, %v509
        %v528 = vadd.f32 %v526, %v527
        %v529 = vadd.f32 %v519, %v528
        %v530 = vadd.f32 %v461, %v529
        %531 = vrot.lane.b32.xlu0 %v344, 2
        %v532 = vpop.permute.xlu0 %531
        %533 = vrot.lane.b32.xlu0 %v344, 1
        %v534 = vpop.permute.xlu0 %533
        %535 = vrot.lane.b32.xlu0 %v344, 127
        %v536 = vpop.permute.xlu0 %535
        %537 = vrot.lane.b32.xlu0 %v344, 126
        %v538 = vpop.permute.xlu0 %537
        %v539 = vmul.f32 %v471, %v532
        %v540 = vmul.f32 %v473, %v534
        %v541 = vadd.f32 %v539, %v540
        %v542 = vmul.f32 %v476, %v344
        %v543 = vadd.f32 %v541, %v542
        %v544 = vmul.f32 %v479, %v536
        %v545 = vadd.f32 %v543, %v544
        %v546 = vmul.f32 %v482, %v538
        %v547 = vadd.f32 %v545, %v546
        %v548 = vsub.f32 0.0, %v547
        %v549 = vadd.f32 %v530, %v548
        %v550 = vmul.f32 %v486, %v532
        %v551 = vmul.f32 %v488, %v534
        %v552 = vadd.f32 %v550, %v551
        %v553 = vmul.f32 %v491, %v344
        %v554 = vadd.f32 %v552, %v553
        %v555 = vmul.f32 %v494, %v536
        %v556 = vadd.f32 %v554, %v555
        %v557 = vmul.f32 %v497, %v538
        %v558 = vadd.f32 %v556, %v557
        %v559 = vadd.f32 %v441, %v558
        %560 = vrot.lane.b32.xlu0 %v352, 2
        %v561 = vpop.permute.xlu0 %560
        %562 = vrot.lane.b32.xlu0 %v352, 1
        %v563 = vpop.permute.xlu0 %562
        %564 = vrot.lane.b32.xlu0 %v352, 127
        %v565 = vpop.permute.xlu0 %564
        %566 = vrot.lane.b32.xlu0 %v352, 126
        %v567 = vpop.permute.xlu0 %566
        %v568 = vmul.f32 %v471, %v561
        %v569 = vmul.f32 %v473, %v563
        %v570 = vadd.f32 %v568, %v569
        %v571 = vmul.f32 %v476, %v352
        %v572 = vadd.f32 %v570, %v571
        %v573 = vmul.f32 %v479, %v565
        %v574 = vadd.f32 %v572, %v573
        %v575 = vmul.f32 %v482, %v567
        %v576 = vadd.f32 %v574, %v575
        %v577 = vsub.f32 0.0, %v576
        %v578 = vadd.f32 %v559, %v577
        %v579 = vperm.slane %v349, 4
        %v580 = vmul.f32 %v501, %v579
        %581 = vst [vmem:[%s321] sm:$0xff] %v580
        %v582 = vmul.f32 %v549, %v579
        %s583 = scalar_lea.vmem %s321, 8 [#allocation2]
        %584 = vst [vmem:[%s583] sm:$0xff] %v582
        %s585 = scalar_lea.vmem %s321, 16 [#allocation2]
        %586 = vst [vmem:[%s585] sm:$0xff] %v578
        %s587 = sand.u32 %s201, 1
        %s588 = scalar_lea.sflag [#allocation3], %s587
        %s589 = sand.u32 %s201, 1
        %s590 = smul.addr %s589, 24
        %s591 = scalar_lea.vmem [#allocation2], %s590
        // Predicated region
        $region49: #{_forward.1} parent=47 // pred_check
          %p592 = pneg %p211
        $region50: #{_forward.1} parent=47 // pred_check_branch
          %594 = sbr.rel (%p592) target = $region52
        $region51: #{_forward.1} parent=47 // pred_region
          %596 = vsyncadd %s588, 0
          %s597 = smul.addr %s21, 8
          %s598 = scalar_lea.hbm %s7, %s597
          %s599 = sshll.u32 %s591, 4
          %s600 = int_to_ptr.vmem [resolvable:$true] %s599
          %s601 = sshll.u32 %s598, 4
          %s602 = int_to_ptr.hbm [resolvable:$true] %s601
          %607 = dma.vmem_to_hbm [thread:$0]  %s600, 384, %s602, %s588, 128, 512, 8
        $region52: #{_forward.1} parent=47 // pred_fallthru
          _
      $region48: #{_forward.1} parent=5 // pred_fallthru
        _
      %p608 = scmp.le.s32.totalorder 2, %s16
      // Predicated region
      $region53: #{_forward.1} parent=5 // pred_check
        %p609 = pneg %p608
      $region54: #{_forward.1} parent=5 // pred_check_branch
        %611 = sbr.rel (%p609) target = $region56
      $region55: #{_forward.1} parent=5 // pred_region
        %s612 = ssub.s32 %s16, 2
        // Predicated region
        $region57: #{_forward.1} parent=55 // pred_check
          %p613 = pneg %p217
        $region58: #{_forward.1} parent=55 // pred_check_branch
          %615 = sbr.rel (%p613) target = $region60
        $region59: #{_forward.1} parent=55 // pred_region
          %s616 = sand.u32 %s202, 1
          %s617 = scalar_lea.sflag [#allocation3], %s616
          %s618 = sand.u32 %s202, 1
          %s619 = smul.addr %s618, 24
          %s620 = scalar_lea.vmem [#allocation2], %s619
          %622 = dma.done %s617, 384
        $region60: #{_forward.1} parent=55 // pred_fallthru
          _
      $region56: #{_forward.1} parent=5 // pred_fallthru
        _
    $region6: #{_forward.1} parent=1 // loop_footer
      %s20 = sadd.s32 1, %s16
    $region7: #{_forward.1} parent=1 // loop_footer_branch
      %15 = sbr.rel target = $region3
    $region8: #{_forward.1} parent=1 // loop_exit
      _
    %623 = vsyncpa [#allocation3], 1
    %s624 = scalar_lea.sflag [#allocation3], 1
    %625 = vsyncpa %s624, 1

</llo_original>
